<compile_context>
chip_gen: v5e
topology: v5e:2x2
jax: 0.10.0
libtpu: 0.0.40
codegen_flags: <defaults>
</compile_context>

<pallas_src>
import math
import numpy as np
import jax
import jax.numpy as jnp
from jax.experimental import pallas as pl
from jax.experimental.pallas import tpu as pltpu

# ---- small, forward-consistent config (LLaMAConfig scaled down) ----
EMB_DIM = 32
NHEADS = 4
HEAD_DIM = EMB_DIM // NHEADS                       # emb_kq == emb_v == 8
HIDDEN_GROW = 8.0 / 3.0
MULTIPLE_OF = 16
HIDDEN_DIM = MULTIPLE_OF * ((int(HIDDEN_GROW * EMB_DIM) + MULTIPLE_OF - 1) // MULTIPLE_OF)  # 96
ROPE_THETA = 10000.0
BATCH = 2
SEQ = 8


def _tensorcores_per_chip() -> int:
    """2 TensorCores per chip only on v7x (per the listed generations)."""
    try:
        kind = jax.devices()[0].device_kind.lower()
    except Exception:
        return 1
    return 2 if ("v7" in kind or "7x" in kind) else 1


def _llama_block_body(x_ref, a_ref, cos_ref, sin_ref, m_ref,
                      wext_ref, wo_ref, wg1_ref, w2_ref, o_ref, *, nb):
    """One program processes `nb` batches of S rows each (attention is batch-local)."""
    f32, bf16 = jnp.float32, jnp.bfloat16
    R, D = x_ref.shape                                  # R = nb * S rows
    NH, HD = NHEADS, HEAD_DIM
    S = m_ref.shape[0] // NH
    H = wg1_ref.shape[1] // 2

    x = x_ref[...]                                      # (R, D) f32

    # ---------------- attention sub-layer ----------------
    # DyT "norm": ln.weight is folded into the w_ext rows, only tanh(alpha*x) remains.
    h = jnp.tanh(a_ref[0] * x)

    # Fused projection: columns are [q*scale | k | v | q_swap*scale | k_swap].
    # The interleaved RoPE pair-swap (-x[2i+1], x[2i]) is pre-folded into the extra
    # weight columns, so the rotation below is pure VPU mul/add (no lane shifts, no XLU).
    qkv = jnp.dot(h.astype(bf16), wext_ref[...], preferred_element_type=f32)   # (R, 5D)
    q, k, v = qkv[:, :D], qkv[:, D:2 * D], qkv[:, 2 * D:3 * D]
    qs, ks = qkv[:, 3 * D:4 * D], qkv[:, 4 * D:5 * D]

    cos, sin = cos_ref[...], sin_ref[...]
    q = q * cos + qs * sin                              # rotary; 1/sqrt(HD) already folded
    k = k * cos + ks * sin

    mask = m_ref[...]                                   # (NH*S, NH*HD) head block-diagonal

    outs = []
    for b in range(nb):                                 # static unroll over batches in block
        rows = slice(b * S, (b + 1) * S)
        q_b = q[rows].astype(bf16)                                              # (S, NH*HD)
        # Head-block-diagonal K / V slabs: all heads' scores / PV in ONE matmul each
        # (2 MXU pushes per batch instead of 2*NH tiny ones).
        k_blk = (jnp.concatenate([k[rows]] * NH, axis=0) * mask).astype(bf16)   # (NH*S, NH*HD)
        v_blk = (jnp.concatenate([v[rows]] * NH, axis=0) * mask).astype(bf16)
        s_all = jnp.einsum('qd,nd->qn', q_b, k_blk,
                           preferred_element_type=f32)                          # (S, NH*S)
        # per-head softmax on lane slices (no mask, non-causal -> full softmax)
        p_parts = []
        for hh in range(NH):
            sh = s_all[:, hh * S:(hh + 1) * S]
            sh = sh - jnp.max(sh, axis=-1, keepdims=True)
            eh = jnp.exp(sh)
            p_parts.append(eh * pl.reciprocal(jnp.sum(eh, axis=-1, keepdims=True),
                                              approx=True))
        p_all = jnp.concatenate(p_parts, axis=-1).astype(bf16)                  # (S, NH*S)
        outs.append(jnp.dot(p_all, v_blk, preferred_element_type=f32))          # (S, NH*HD)
    attn = outs[0] if nb == 1 else jnp.concatenate(outs, axis=0)                # (R, NH*HD)
    attn = jnp.dot(attn.astype(bf16), wo_ref[...], preferred_element_type=f32)  # output proj

    x1 = x + attn                                       # residual 1 (f32)

    # ---------------- feed-forward (gated linear unit, swish gate) ----------------
    h2 = jnp.tanh(a_ref[1] * x1)                        # ff_ln.weight folded into wg1 rows
    gv = jnp.dot(h2.astype(bf16), wg1_ref[...], preferred_element_type=f32)     # (R, 2H)
    g, u = gv[:, :H], gv[:, H:]
    act = (0.5 * g * (1.0 + jnp.tanh(0.5 * g))) * u     # silu via ONE tanh EUP push
    ff = jnp.dot(act.astype(bf16), w2_ref[...], preferred_element_type=f32)

    o_ref[...] = x1 + ff                                # residual 2


def llama_block(x, p):
    B, S, D = x.shape
    NH, HD = NHEADS, HEAD_DIM

    # v7x (2 TCs): grid=(B,) so the two batch programs land on different cores.
    # v5e/v6e (1 TC): grid is a serial loop -> fold all batches into one program to
    # avoid ~0.35us per grid step (comparable to this toy block's whole compute).
    if _tensorcores_per_chip() >= 2 and B > 1:
        nb, grid = 1, (B,)
    else:
        nb, grid = B, (1,)
    R = nb * S

    x2 = x.reshape(B * S, D)
    cos = jnp.tile(p['cos_rep'], (nb, 1))               # (R, NH*HD)
    sin = jnp.tile(p['sin_rep'], (nb, 1))

    def kernel(x_ref, a_ref, cos_ref, sin_ref, m_ref,
               wext_ref, wo_ref, wg1_ref, w2_ref, o_ref):
        _llama_block_body(x_ref, a_ref, cos_ref, sin_ref, m_ref,
                          wext_ref, wo_ref, wg1_ref, w2_ref, o_ref, nb=nb)

    row_block = lambda b: (b, 0)
    const_block = lambda b: (0, 0)
    # NOTE: at real dims, mark the constant-index weight specs pipeline_mode=pl.Buffered(1)
    # to halve their VMEM footprint; irrelevant at this toy size.
    in_specs = [
        pl.BlockSpec((R, D), row_block),                           # x rows for this program
        pl.BlockSpec(memory_space=pltpu.MemorySpace.SMEM),         # [ln.alpha, ff_ln.alpha]
        pl.BlockSpec(cos.shape, const_block),                      # RoPE cos (pair-repeated)
        pl.BlockSpec(sin.shape, const_block),                      # RoPE sin (pair-repeated)
        pl.BlockSpec(p['head_mask'].shape, const_block),           # head block-diagonal mask
        pl.BlockSpec(p['w_ext'].shape, const_block),               # fused [q|k|v|qs|ks] (D,5D)
        pl.BlockSpec(p['w_o_k'].shape, const_block),               # output proj (NH*HD, D)
        pl.BlockSpec(p['w_g1_k'].shape, const_block),              # fused gate/value (D, 2H)
        pl.BlockSpec(p['w_2_k'].shape, const_block),               # down proj (H, D)
    ]

    out = pl.pallas_call(
        kernel,
        out_shape=jax.ShapeDtypeStruct((B * S, D), jnp.float32),
        grid=grid,
        in_specs=in_specs,
        out_specs=pl.BlockSpec((R, D), row_block),
        compiler_params=pltpu.CompilerParams(dimension_semantics=("parallel",)),
    )(x2, p['alphas'], cos, sin, p['head_mask'],
      p['w_ext'], p['w_o_k'], p['w_g1_k'], p['w_2_k'])
    return out.reshape(B, S, D)


def make_params(key):
    D, H, NH, HD, S = EMB_DIM, HIDDEN_DIM, NHEADS, HEAD_DIM, SEQ
    ks = jax.random.split(key, 8)

    # torch-layout base weights (out_features, in_features), no biases
    w_qkv_t = jax.random.normal(ks[0], (3 * D, D), jnp.float32) * 0.05     # fused QKV
    w_dense_t = jax.random.normal(ks[1], (D, NH * HD), jnp.float32) * 0.05  # attn out proj
    w_g1_t = jax.random.normal(ks[2], (2 * H, D), jnp.float32) * 0.05       # fused [gate|value]
    w_2_t = jax.random.normal(ks[3], (D, H), jnp.float32) * 0.05            # down proj
    # DyT norm params (non-trivial so the host-side folding is actually exercised)
    ln_a = 1.0 + 0.1 * jax.random.normal(ks[4], (1,), jnp.float32)
    ln_w = 1.0 + 0.1 * jax.random.normal(ks[5], (D,), jnp.float32)
    ffln_a = 1.0 + 0.1 * jax.random.normal(ks[6], (1,), jnp.float32)
    ffln_w = 1.0 + 0.1 * jax.random.normal(ks[7], (D,), jnp.float32)

    # right-multiply layouts (reference path, f32)
    w_qkv = w_qkv_t.T        # (D, 3D) cols [q|k|v]
    w_o = w_dense_t.T        # (NH*HD, D)
    w_g1 = w_g1_t.T          # (D, 2H) cols [gate|value]
    w_2 = w_2_t.T            # (H, D)

    # rotary half tables (interleaved-pair convention, positions 0..S-1, theta=10000)
    inv_freq = 1.0 / (ROPE_THETA ** (jnp.arange(0, HD, 2, dtype=jnp.float32) / HD))
    pos = jnp.arange(S, dtype=jnp.float32)
    ang = pos[:, None] * inv_freq[None, :]                         # (S, HD//2)
    cos_half, sin_half = jnp.cos(ang), jnp.sin(ang)

    # ---------------- kernel-side folded / fused parameters (bf16 MXU operands) --------
    scale = 1.0 / math.sqrt(HD)
    wq = w_qkv[:, :D] * scale          # fold 1/sqrt(HD) into q columns
    wk = w_qkv[:, D:2 * D]
    wv = w_qkv[:, 2 * D:]

    def pair_swap_neg(w):              # col 2i -> -col(2i+1), col 2i+1 -> col(2i)
        wp = w.reshape(w.shape[0], -1, 2)
        return jnp.stack([-wp[..., 1], wp[..., 0]], axis=-1).reshape(w.shape)

    w_ext = jnp.concatenate([wq, wk, wv, pair_swap_neg(wq), pair_swap_neg(wk)], axis=-1)
    w_ext = (ln_w[:, None] * w_ext).astype(jnp.bfloat16)           # fold ln.weight, (D, 5D)
    w_g1_k = (ffln_w[:, None] * w_g1).astype(jnp.bfloat16)         # fold ff_ln.weight
    w_o_k = w_o.astype(jnp.bfloat16)
    w_2_k = w_2.astype(jnp.bfloat16)

    # pair-repeated rotary tables tiled across heads -> apply to the (·, NH*HD) q/k slabs
    cos_rep = jnp.tile(jnp.repeat(cos_half, 2, axis=-1), (1, NH))  # (S, NH*HD)
    sin_rep = jnp.tile(jnp.repeat(sin_half, 2, axis=-1), (1, NH))

    # head block-diagonal mask: mask[n, d] = 1 iff (n // S) == (d // HD)
    row_head = np.arange(NH * S) // S
    col_head = np.arange(NH * HD) // HD
    head_mask = jnp.asarray(row_head[:, None] == col_head[None, :], jnp.float32)

    alphas = jnp.concatenate([ln_a, ffln_a])                       # (2,) SMEM scalars

    return dict(
        # kernel params
        alphas=alphas, cos_rep=cos_rep, sin_rep=sin_rep, head_mask=head_mask,
        w_ext=w_ext, w_o_k=w_o_k, w_g1_k=w_g1_k, w_2_k=w_2_k,
        # reference params (unfolded, f32)
        ln_a=ln_a, ln_w=ln_w, ffln_a=ffln_a, ffln_w=ffln_w,
        cos_half=cos_half, sin_half=sin_half,
        w_qkv=w_qkv, w_o=w_o, w_g1=w_g1, w_2=w_2)


def reference_block(x, p):
    """Pure-JAX f32 reference of the same forward pass (for correctness check)."""
    B, S, D = x.shape
    NH, HD, H = NHEADS, HEAD_DIM, HIDDEN_DIM

    def dyt(v, a, w):
        return w * jnp.tanh(a[0] * v)

    def rope(t, cos_h, sin_h):                                  # t: (B, S, NH, HD)
        tp = t.reshape(B, S, NH, HD // 2, 2)
        t1, t2 = tp[..., 0], tp[..., 1]
        c = cos_h[None, :, None, :]
        s = sin_h[None, :, None, :]
        return jnp.stack([t1 * c - t2 * s, t2 * c + t1 * s], axis=-1).reshape(B, S, NH, HD)

    h = dyt(x, p['ln_a'], p['ln_w'])
    qkv = h @ p['w_qkv']
    q = qkv[..., 0 * D:1 * D].reshape(B, S, NH, HD)
    k = qkv[..., 1 * D:2 * D].reshape(B, S, NH, HD)
    v = qkv[..., 2 * D:3 * D].reshape(B, S, NH, HD)
    q = rope(q, p['cos_half'], p['sin_half'])
    k = rope(k, p['cos_half'], p['sin_half'])
    s = jnp.einsum('bqhd,bkhd->bhqk', q, k) / math.sqrt(HD)
    a = jax.nn.softmax(s, axis=-1)
    o = jnp.einsum('bhqk,bkhd->bqhd', a, v).reshape(B, S, NH * HD)
    x = x + o @ p['w_o']

    h2 = dyt(x, p['ffln_a'], p['ffln_w'])
    gv = h2 @ p['w_g1']
    g, u = gv[..., :H], gv[..., H:]
    ff = (jax.nn.silu(g) * u) @ p['w_2']
    return x + ff


if __name__ == "__main__":
    key = jax.random.PRNGKey(0)
    kx, kp = jax.random.split(key)
    x = jax.random.normal(kx, (BATCH, SEQ, EMB_DIM), jnp.float32)
    params = make_params(kp)

    out = jax.block_until_ready(llama_block(x, params))

    with jax.default_matmul_precision("highest"):
        ref = jax.block_until_ready(reference_block(x, params))

    assert out.shape == (BATCH, SEQ, EMB_DIM)
    err = float(jnp.max(jnp.abs(out - ref)))
    # bf16 MXU operands + approx reciprocal in the softmax -> a few 1e-3 abs error max.
    assert np.isfinite(np.asarray(out)).all() and err < 2e-2, f"max abs err {err}"
    print("KERNEL_OK")
</pallas_src>

<mosaic_0001>
module attributes {stable_mosaic.version = 11 : i64} {
  func.func @kernel(%arg0: i32, %arg1: memref<16x32xf32, #tpu.memory_space<vmem>>, %arg2: memref<2xf32, #tpu.memory_space<smem>>, %arg3: memref<16x32xf32, #tpu.memory_space<vmem>>, %arg4: memref<16x32xf32, #tpu.memory_space<vmem>>, %arg5: memref<32x32xf32, #tpu.memory_space<vmem>>, %arg6: memref<32x160xbf16, #tpu.memory_space<vmem>>, %arg7: memref<32x32xbf16, #tpu.memory_space<vmem>>, %arg8: memref<32x192xbf16, #tpu.memory_space<vmem>>, %arg9: memref<96x32xbf16, #tpu.memory_space<vmem>>, %arg10: memref<16x32xf32, #tpu.memory_space<vmem>>) attributes {dimension_semantics = [#tpu.dimension_semantics<parallel>], iteration_bounds = array<i64: 1>, scalar_prefetch = 0 : i64, scratch_operands = 0 : i64, tpu.core_type = #tpu.core_type<tc>, window_params = [{transform_indices = @transform_0, window_bounds = array<i64: 16, 32>}, {transform_indices = @transform_1, window_bounds = array<i64: 2>}, {pipeline_mode = #tpu.pipeline_mode<synchronous>, transform_indices = @transform_2, window_bounds = array<i64: 16, 32>}, {pipeline_mode = #tpu.pipeline_mode<synchronous>, transform_indices = @transform_3, window_bounds = array<i64: 16, 32>}, {pipeline_mode = #tpu.pipeline_mode<synchronous>, transform_indices = @transform_4, window_bounds = array<i64: 32, 32>}, {pipeline_mode = #tpu.pipeline_mode<synchronous>, transform_indices = @transform_5, window_bounds = array<i64: 32, 160>}, {pipeline_mode = #tpu.pipeline_mode<synchronous>, transform_indices = @transform_6, window_bounds = array<i64: 32, 32>}, {pipeline_mode = #tpu.pipeline_mode<synchronous>, transform_indices = @transform_7, window_bounds = array<i64: 32, 192>}, {pipeline_mode = #tpu.pipeline_mode<synchronous>, transform_indices = @transform_8, window_bounds = array<i64: 96, 32>}, {transform_indices = @transform_9, window_bounds = array<i64: 16, 32>}]} {
    %c0 = arith.constant 0 : index
    %c0_0 = arith.constant 0 : index
    %0 = vector.load %arg1[%c0, %c0_0] : memref<16x32xf32, #tpu.memory_space<vmem>>, vector<16x32xf32>
    %c0_1 = arith.constant 0 : index
    %1 = memref.load %arg2[%c0_1] : memref<2xf32, #tpu.memory_space<smem>>
    %2 = vector.broadcast %1 : f32 to vector<16x32xf32>
    %3 = arith.mulf %2, %0 : vector<16x32xf32>
    %4 = math.tanh %3 : vector<16x32xf32>
    %5 = arith.truncf %4 : vector<16x32xf32> to vector<16x32xbf16>
    %c0_2 = arith.constant 0 : index
    %c0_3 = arith.constant 0 : index
    %6 = vector.load %arg6[%c0_2, %c0_3] : memref<32x160xbf16, #tpu.memory_space<vmem>>, vector<32x160xbf16>
    %cst = arith.constant dense<0.000000e+00> : vector<16x160xf32>
    %7 = tpu.matmul %5, %6, %cst {dimension_numbers = #tpu.dot_dimension_numbers<[1], [0], [0], [1], [0, 0, 1, 1], [], []>} : vector<16x32xbf16>, vector<32x160xbf16>, vector<16x160xf32> -> vector<16x160xf32>
    %8 = vector.extract_strided_slice %7 {offsets = [0, 0], sizes = [16, 32], strides = [1, 1]} : vector<16x160xf32> to vector<16x32xf32>
    %9 = vector.extract_strided_slice %7 {offsets = [0, 32], sizes = [16, 32], strides = [1, 1]} : vector<16x160xf32> to vector<16x32xf32>
    %10 = vector.extract_strided_slice %7 {offsets = [0, 64], sizes = [16, 32], strides = [1, 1]} : vector<16x160xf32> to vector<16x32xf32>
    %11 = vector.extract_strided_slice %7 {offsets = [0, 96], sizes = [16, 32], strides = [1, 1]} : vector<16x160xf32> to vector<16x32xf32>
    %12 = vector.extract_strided_slice %7 {offsets = [0, 128], sizes = [16, 32], strides = [1, 1]} : vector<16x160xf32> to vector<16x32xf32>
    %c0_4 = arith.constant 0 : index
    %c0_5 = arith.constant 0 : index
    %13 = vector.load %arg3[%c0_4, %c0_5] : memref<16x32xf32, #tpu.memory_space<vmem>>, vector<16x32xf32>
    %c0_6 = arith.constant 0 : index
    %c0_7 = arith.constant 0 : index
    %14 = vector.load %arg4[%c0_6, %c0_7] : memref<16x32xf32, #tpu.memory_space<vmem>>, vector<16x32xf32>
    %15 = arith.mulf %8, %13 : vector<16x32xf32>
    %16 = arith.mulf %11, %14 : vector<16x32xf32>
    %17 = arith.addf %15, %16 : vector<16x32xf32>
    %18 = arith.mulf %9, %13 : vector<16x32xf32>
    %19 = arith.mulf %12, %14 : vector<16x32xf32>
    %20 = arith.addf %18, %19 : vector<16x32xf32>
    %c0_8 = arith.constant 0 : index
    %c0_9 = arith.constant 0 : index
    %21 = vector.load %arg5[%c0_8, %c0_9] : memref<32x32xf32, #tpu.memory_space<vmem>>, vector<32x32xf32>
    %22 = vector.extract_strided_slice %17 {offsets = [0, 0], sizes = [8, 32], strides = [1, 1]} : vector<16x32xf32> to vector<8x32xf32>
    %23 = arith.truncf %22 : vector<8x32xf32> to vector<8x32xbf16>
    %24 = vector.extract_strided_slice %20 {offsets = [0, 0], sizes = [8, 32], strides = [1, 1]} : vector<16x32xf32> to vector<8x32xf32>
    %25 = tpu.concatenate %24, %24, %24, %24 in 0 : vector<8x32xf32>, vector<8x32xf32>, vector<8x32xf32>, vector<8x32xf32> -> vector<32x32xf32>
    %26 = arith.mulf %25, %21 : vector<32x32xf32>
    %27 = arith.truncf %26 : vector<32x32xf32> to vector<32x32xbf16>
    %28 = vector.extract_strided_slice %10 {offsets = [0, 0], sizes = [8, 32], strides = [1, 1]} : vector<16x32xf32> to vector<8x32xf32>
    %29 = tpu.concatenate %28, %28, %28, %28 in 0 : vector<8x32xf32>, vector<8x32xf32>, vector<8x32xf32>, vector<8x32xf32> -> vector<32x32xf32>
    %30 = arith.mulf %29, %21 : vector<32x32xf32>
    %31 = arith.truncf %30 : vector<32x32xf32> to vector<32x32xbf16>
    "tpu.trace_start"() <{level = 10 : i32, message = "qd,nd->qn"}> : () -> ()
    %cst_10 = arith.constant dense<0.000000e+00> : vector<8x32xf32>
    %32 = tpu.matmul %23, %27, %cst_10 {dimension_numbers = #tpu.dot_dimension_numbers<[1], [1], [0], [0], [0, 0, 1, 0], [], []>} : vector<8x32xbf16>, vector<32x32xbf16>, vector<8x32xf32> -> vector<8x32xf32>
    "tpu.trace_stop"() : () -> ()
    %33 = vector.extract_strided_slice %32 {offsets = [0, 0], sizes = [8, 8], strides = [1, 1]} : vector<8x32xf32> to vector<8x8xf32>
    %cst_11 = arith.constant dense<0xFF800000> : vector<8xf32>
    %34 = vector.multi_reduction <maximumf>, %33, %cst_11 [1] : vector<8x8xf32> to vector<8xf32>
    %35 = vector.shape_cast %34 : vector<8xf32> to vector<8x1xf32>
    %36 = vector.broadcast %35 : vector<8x1xf32> to vector<8x8xf32>
    %37 = arith.subf %33, %36 : vector<8x8xf32>
    %38 = math.exp %37 : vector<8x8xf32>
    %cst_12 = arith.constant dense<0.000000e+00> : vector<8xf32>
    %39 = vector.multi_reduction <add>, %38, %cst_12 [1] : vector<8x8xf32> to vector<8xf32>
    %40 = vector.shape_cast %39 : vector<8xf32> to vector<8x1xf32>
    %41 = tpu.reciprocal %40 {approx = true} : vector<8x1xf32> -> vector<8x1xf32>
    %42 = vector.broadcast %41 : vector<8x1xf32> to vector<8x8xf32>
    %43 = arith.mulf %38, %42 : vector<8x8xf32>
    %44 = vector.extract_strided_slice %32 {offsets = [0, 8], sizes = [8, 8], strides = [1, 1]} : vector<8x32xf32> to vector<8x8xf32>
    %cst_13 = arith.constant dense<0xFF800000> : vector<8xf32>
    %45 = vector.multi_reduction <maximumf>, %44, %cst_13 [1] : vector<8x8xf32> to vector<8xf32>
    %46 = vector.shape_cast %45 : vector<8xf32> to vector<8x1xf32>
    %47 = vector.broadcast %46 : vector<8x1xf32> to vector<8x8xf32>
    %48 = arith.subf %44, %47 : vector<8x8xf32>
    %49 = math.exp %48 : vector<8x8xf32>
    %cst_14 = arith.constant dense<0.000000e+00> : vector<8xf32>
    %50 = vector.multi_reduction <add>, %49, %cst_14 [1] : vector<8x8xf32> to vector<8xf32>
    %51 = vector.shape_cast %50 : vector<8xf32> to vector<8x1xf32>
    %52 = tpu.reciprocal %51 {approx = true} : vector<8x1xf32> -> vector<8x1xf32>
    %53 = vector.broadcast %52 : vector<8x1xf32> to vector<8x8xf32>
    %54 = arith.mulf %49, %53 : vector<8x8xf32>
    %55 = vector.extract_strided_slice %32 {offsets = [0, 16], sizes = [8, 8], strides = [1, 1]} : vector<8x32xf32> to vector<8x8xf32>
    %cst_15 = arith.constant dense<0xFF800000> : vector<8xf32>
    %56 = vector.multi_reduction <maximumf>, %55, %cst_15 [1] : vector<8x8xf32> to vector<8xf32>
    %57 = vector.shape_cast %56 : vector<8xf32> to vector<8x1xf32>
    %58 = vector.broadcast %57 : vector<8x1xf32> to vector<8x8xf32>
    %59 = arith.subf %55, %58 : vector<8x8xf32>
    %60 = math.exp %59 : vector<8x8xf32>
    %cst_16 = arith.constant dense<0.000000e+00> : vector<8xf32>
    %61 = vector.multi_reduction <add>, %60, %cst_16 [1] : vector<8x8xf32> to vector<8xf32>
    %62 = vector.shape_cast %61 : vector<8xf32> to vector<8x1xf32>
    %63 = tpu.reciprocal %62 {approx = true} : vector<8x1xf32> -> vector<8x1xf32>
    %64 = vector.broadcast %63 : vector<8x1xf32> to vector<8x8xf32>
    %65 = arith.mulf %60, %64 : vector<8x8xf32>
    %66 = vector.extract_strided_slice %32 {offsets = [0, 24], sizes = [8, 8], strides = [1, 1]} : vector<8x32xf32> to vector<8x8xf32>
    %cst_17 = arith.constant dense<0xFF800000> : vector<8xf32>
    %67 = vector.multi_reduction <maximumf>, %66, %cst_17 [1] : vector<8x8xf32> to vector<8xf32>
    %68 = vector.shape_cast %67 : vector<8xf32> to vector<8x1xf32>
    %69 = vector.broadcast %68 : vector<8x1xf32> to vector<8x8xf32>
    %70 = arith.subf %66, %69 : vector<8x8xf32>
    %71 = math.exp %70 : vector<8x8xf32>
    %cst_18 = arith.constant dense<0.000000e+00> : vector<8xf32>
    %72 = vector.multi_reduction <add>, %71, %cst_18 [1] : vector<8x8xf32> to vector<8xf32>
    %73 = vector.shape_cast %72 : vector<8xf32> to vector<8x1xf32>
    %74 = tpu.reciprocal %73 {approx = true} : vector<8x1xf32> -> vector<8x1xf32>
    %75 = vector.broadcast %74 : vector<8x1xf32> to vector<8x8xf32>
    %76 = arith.mulf %71, %75 : vector<8x8xf32>
    %77 = tpu.concatenate %43, %54, %65, %76 in 1 : vector<8x8xf32>, vector<8x8xf32>, vector<8x8xf32>, vector<8x8xf32> -> vector<8x32xf32>
    %78 = arith.truncf %77 : vector<8x32xf32> to vector<8x32xbf16>
    %cst_19 = arith.constant dense<0.000000e+00> : vector<8x32xf32>
    %79 = tpu.matmul %78, %31, %cst_19 {dimension_numbers = #tpu.dot_dimension_numbers<[1], [0], [0], [1], [0, 0, 1, 1], [], []>} : vector<8x32xbf16>, vector<32x32xbf16>, vector<8x32xf32> -> vector<8x32xf32>
    %80 = vector.extract_strided_slice %17 {offsets = [8, 0], sizes = [8, 32], strides = [1, 1]} : vector<16x32xf32> to vector<8x32xf32>
    %81 = arith.truncf %80 : vector<8x32xf32> to vector<8x32xbf16>
    %82 = vector.extract_strided_slice %20 {offsets = [8, 0], sizes = [8, 32], strides = [1, 1]} : vector<16x32xf32> to vector<8x32xf32>
    %83 = tpu.concatenate %82, %82, %82, %82 in 0 : vector<8x32xf32>, vector<8x32xf32>, vector<8x32xf32>, vector<8x32xf32> -> vector<32x32xf32>
    %84 = arith.mulf %83, %21 : vector<32x32xf32>
    %85 = arith.truncf %84 : vector<32x32xf32> to vector<32x32xbf16>
    %86 = vector.extract_strided_slice %10 {offsets = [8, 0], sizes = [8, 32], strides = [1, 1]} : vector<16x32xf32> to vector<8x32xf32>
    %87 = tpu.concatenate %86, %86, %86, %86 in 0 : vector<8x32xf32>, vector<8x32xf32>, vector<8x32xf32>, vector<8x32xf32> -> vector<32x32xf32>
    %88 = arith.mulf %87, %21 : vector<32x32xf32>
    %89 = arith.truncf %88 : vector<32x32xf32> to vector<32x32xbf16>
    "tpu.trace_start"() <{level = 10 : i32, message = "qd,nd->qn"}> : () -> ()
    %cst_20 = arith.constant dense<0.000000e+00> : vector<8x32xf32>
    %90 = tpu.matmul %81, %85, %cst_20 {dimension_numbers = #tpu.dot_dimension_numbers<[1], [1], [0], [0], [0, 0, 1, 0], [], []>} : vector<8x32xbf16>, vector<32x32xbf16>, vector<8x32xf32> -> vector<8x32xf32>
    "tpu.trace_stop"() : () -> ()
    %91 = vector.extract_strided_slice %90 {offsets = [0, 0], sizes = [8, 8], strides = [1, 1]} : vector<8x32xf32> to vector<8x8xf32>
    %cst_21 = arith.constant dense<0xFF800000> : vector<8xf32>
    %92 = vector.multi_reduction <maximumf>, %91, %cst_21 [1] : vector<8x8xf32> to vector<8xf32>
    %93 = vector.shape_cast %92 : vector<8xf32> to vector<8x1xf32>
    %94 = vector.broadcast %93 : vector<8x1xf32> to vector<8x8xf32>
    %95 = arith.subf %91, %94 : vector<8x8xf32>
    %96 = math.exp %95 : vector<8x8xf32>
    %cst_22 = arith.constant dense<0.000000e+00> : vector<8xf32>
    %97 = vector.multi_reduction <add>, %96, %cst_22 [1] : vector<8x8xf32> to vector<8xf32>
    %98 = vector.shape_cast %97 : vector<8xf32> to vector<8x1xf32>
    %99 = tpu.reciprocal %98 {approx = true} : vector<8x1xf32> -> vector<8x1xf32>
    %100 = vector.broadcast %99 : vector<8x1xf32> to vector<8x8xf32>
    %101 = arith.mulf %96, %100 : vector<8x8xf32>
    %102 = vector.extract_strided_slice %90 {offsets = [0, 8], sizes = [8, 8], strides = [1, 1]} : vector<8x32xf32> to vector<8x8xf32>
    %cst_23 = arith.constant dense<0xFF800000> : vector<8xf32>
    %103 = vector.multi_reduction <maximumf>, %102, %cst_23 [1] : vector<8x8xf32> to vector<8xf32>
    %104 = vector.shape_cast %103 : vector<8xf32> to vector<8x1xf32>
    %105 = vector.broadcast %104 : vector<8x1xf32> to vector<8x8xf32>
    %106 = arith.subf %102, %105 : vector<8x8xf32>
    %107 = math.exp %106 : vector<8x8xf32>
    %cst_24 = arith.constant dense<0.000000e+00> : vector<8xf32>
    %108 = vector.multi_reduction <add>, %107, %cst_24 [1] : vector<8x8xf32> to vector<8xf32>
    %109 = vector.shape_cast %108 : vector<8xf32> to vector<8x1xf32>
    %110 = tpu.reciprocal %109 {approx = true} : vector<8x1xf32> -> vector<8x1xf32>
    %111 = vector.broadcast %110 : vector<8x1xf32> to vector<8x8xf32>
    %112 = arith.mulf %107, %111 : vector<8x8xf32>
    %113 = vector.extract_strided_slice %90 {offsets = [0, 16], sizes = [8, 8], strides = [1, 1]} : vector<8x32xf32> to vector<8x8xf32>
    %cst_25 = arith.constant dense<0xFF800000> : vector<8xf32>
    %114 = vector.multi_reduction <maximumf>, %113, %cst_25 [1] : vector<8x8xf32> to vector<8xf32>
    %115 = vector.shape_cast %114 : vector<8xf32> to vector<8x1xf32>
    %116 = vector.broadcast %115 : vector<8x1xf32> to vector<8x8xf32>
    %117 = arith.subf %113, %116 : vector<8x8xf32>
    %118 = math.exp %117 : vector<8x8xf32>
    %cst_26 = arith.constant dense<0.000000e+00> : vector<8xf32>
    %119 = vector.multi_reduction <add>, %118, %cst_26 [1] : vector<8x8xf32> to vector<8xf32>
    %120 = vector.shape_cast %119 : vector<8xf32> to vector<8x1xf32>
    %121 = tpu.reciprocal %120 {approx = true} : vector<8x1xf32> -> vector<8x1xf32>
    %122 = vector.broadcast %121 : vector<8x1xf32> to vector<8x8xf32>
    %123 = arith.mulf %118, %122 : vector<8x8xf32>
    %124 = vector.extract_strided_slice %90 {offsets = [0, 24], sizes = [8, 8], strides = [1, 1]} : vector<8x32xf32> to vector<8x8xf32>
    %cst_27 = arith.constant dense<0xFF800000> : vector<8xf32>
    %125 = vector.multi_reduction <maximumf>, %124, %cst_27 [1] : vector<8x8xf32> to vector<8xf32>
    %126 = vector.shape_cast %125 : vector<8xf32> to vector<8x1xf32>
    %127 = vector.broadcast %126 : vector<8x1xf32> to vector<8x8xf32>
    %128 = arith.subf %124, %127 : vector<8x8xf32>
    %129 = math.exp %128 : vector<8x8xf32>
    %cst_28 = arith.constant dense<0.000000e+00> : vector<8xf32>
    %130 = vector.multi_reduction <add>, %129, %cst_28 [1] : vector<8x8xf32> to vector<8xf32>
    %131 = vector.shape_cast %130 : vector<8xf32> to vector<8x1xf32>
    %132 = tpu.reciprocal %131 {approx = true} : vector<8x1xf32> -> vector<8x1xf32>
    %133 = vector.broadcast %132 : vector<8x1xf32> to vector<8x8xf32>
    %134 = arith.mulf %129, %133 : vector<8x8xf32>
    %135 = tpu.concatenate %101, %112, %123, %134 in 1 : vector<8x8xf32>, vector<8x8xf32>, vector<8x8xf32>, vector<8x8xf32> -> vector<8x32xf32>
    %136 = arith.truncf %135 : vector<8x32xf32> to vector<8x32xbf16>
    %cst_29 = arith.constant dense<0.000000e+00> : vector<8x32xf32>
    %137 = tpu.matmul %136, %89, %cst_29 {dimension_numbers = #tpu.dot_dimension_numbers<[1], [0], [0], [1], [0, 0, 1, 1], [], []>} : vector<8x32xbf16>, vector<32x32xbf16>, vector<8x32xf32> -> vector<8x32xf32>
    %138 = tpu.concatenate %79, %137 in 0 : vector<8x32xf32>, vector<8x32xf32> -> vector<16x32xf32>
    %139 = arith.truncf %138 : vector<16x32xf32> to vector<16x32xbf16>
    %c0_30 = arith.constant 0 : index
    %c0_31 = arith.constant 0 : index
    %140 = vector.load %arg7[%c0_30, %c0_31] : memref<32x32xbf16, #tpu.memory_space<vmem>>, vector<32x32xbf16>
    %cst_32 = arith.constant dense<0.000000e+00> : vector<16x32xf32>
    %141 = tpu.matmul %139, %140, %cst_32 {dimension_numbers = #tpu.dot_dimension_numbers<[1], [0], [0], [1], [0, 0, 1, 1], [], []>} : vector<16x32xbf16>, vector<32x32xbf16>, vector<16x32xf32> -> vector<16x32xf32>
    %142 = arith.addf %0, %141 : vector<16x32xf32>
    %c1 = arith.constant 1 : index
    %143 = memref.load %arg2[%c1] : memref<2xf32, #tpu.memory_space<smem>>
    %144 = vector.broadcast %143 : f32 to vector<16x32xf32>
    %145 = arith.mulf %144, %142 : vector<16x32xf32>
    %146 = math.tanh %145 : vector<16x32xf32>
    %147 = arith.truncf %146 : vector<16x32xf32> to vector<16x32xbf16>
    %c0_33 = arith.constant 0 : index
    %c0_34 = arith.constant 0 : index
    %148 = vector.load %arg8[%c0_33, %c0_34] : memref<32x192xbf16, #tpu.memory_space<vmem>>, vector<32x192xbf16>
    %cst_35 = arith.constant dense<0.000000e+00> : vector<16x192xf32>
    %149 = tpu.matmul %147, %148, %cst_35 {dimension_numbers = #tpu.dot_dimension_numbers<[1], [0], [0], [1], [0, 0, 1, 1], [], []>} : vector<16x32xbf16>, vector<32x192xbf16>, vector<16x192xf32> -> vector<16x192xf32>
    %150 = vector.extract_strided_slice %149 {offsets = [0, 0], sizes = [16, 96], strides = [1, 1]} : vector<16x192xf32> to vector<16x96xf32>
    %151 = vector.extract_strided_slice %149 {offsets = [0, 96], sizes = [16, 96], strides = [1, 1]} : vector<16x192xf32> to vector<16x96xf32>
    %cst_36 = arith.constant 5.000000e-01 : f32
    %152 = vector.broadcast %cst_36 : f32 to vector<16x96xf32>
    %153 = arith.mulf %152, %150 : vector<16x96xf32>
    %cst_37 = arith.constant 5.000000e-01 : f32
    %154 = vector.broadcast %cst_37 : f32 to vector<16x96xf32>
    %155 = arith.mulf %154, %150 : vector<16x96xf32>
    %156 = math.tanh %155 : vector<16x96xf32>
    %cst_38 = arith.constant 1.000000e+00 : f32
    %157 = vector.broadcast %cst_38 : f32 to vector<16x96xf32>
    %158 = arith.addf %157, %156 : vector<16x96xf32>
    %159 = arith.mulf %153, %158 : vector<16x96xf32>
    %160 = arith.mulf %159, %151 : vector<16x96xf32>
    %161 = arith.truncf %160 : vector<16x96xf32> to vector<16x96xbf16>
    %c0_39 = arith.constant 0 : index
    %c0_40 = arith.constant 0 : index
    %162 = vector.load %arg9[%c0_39, %c0_40] : memref<96x32xbf16, #tpu.memory_space<vmem>>, vector<96x32xbf16>
    %cst_41 = arith.constant dense<0.000000e+00> : vector<16x32xf32>
    %163 = tpu.matmul %161, %162, %cst_41 {dimension_numbers = #tpu.dot_dimension_numbers<[1], [0], [0], [1], [0, 0, 1, 1], [], []>} : vector<16x96xbf16>, vector<96x32xbf16>, vector<16x32xf32> -> vector<16x32xf32>
    %164 = arith.addf %142, %163 : vector<16x32xf32>
    %c0_42 = arith.constant 0 : index
    %c0_43 = arith.constant 0 : index
    %165 = vector.load %arg10[%c0_42, %c0_43] : memref<16x32xf32, #tpu.memory_space<vmem>>, vector<16x32xf32>
    tpu.vector_store %arg10[%c0_42, %c0_43], %164 {strides = array<i32>} : memref<16x32xf32, #tpu.memory_space<vmem>>, vector<16x32xf32>,
    return
  }
  func.func @transform_0(%arg0: i32) -> (i32, i32) {
    %c0_i32 = arith.constant 0 : i32
    %c0_i32_0 = arith.constant 0 : i32
    return %arg0, %c0_i32 : i32, i32
  }
  func.func @transform_1(%arg0: i32) -> i32 {
    %c0_i32 = arith.constant 0 : i32
    %c0_i32_0 = arith.constant 0 : i32
    return %c0_i32 : i32
  }
  func.func @transform_2(%arg0: i32) -> (i32, i32) {
    %c0_i32 = arith.constant 0 : i32
    %c0_i32_0 = arith.constant 0 : i32
    %c0_i32_1 = arith.constant 0 : i32
    return %c0_i32, %c0_i32_0 : i32, i32
  }
  func.func @transform_3(%arg0: i32) -> (i32, i32) {
    %c0_i32 = arith.constant 0 : i32
    %c0_i32_0 = arith.constant 0 : i32
    %c0_i32_1 = arith.constant 0 : i32
    return %c0_i32, %c0_i32_0 : i32, i32
  }
  func.func @transform_4(%arg0: i32) -> (i32, i32) {
    %c0_i32 = arith.constant 0 : i32
    %c0_i32_0 = arith.constant 0 : i32
    %c0_i32_1 = arith.constant 0 : i32
    return %c0_i32, %c0_i32_0 : i32, i32
  }
  func.func @transform_5(%arg0: i32) -> (i32, i32) {
    %c0_i32 = arith.constant 0 : i32
    %c0_i32_0 = arith.constant 0 : i32
    %c0_i32_1 = arith.constant 0 : i32
    return %c0_i32, %c0_i32_0 : i32, i32
  }
  func.func @transform_6(%arg0: i32) -> (i32, i32) {
    %c0_i32 = arith.constant 0 : i32
    %c0_i32_0 = arith.constant 0 : i32
    %c0_i32_1 = arith.constant 0 : i32
    return %c0_i32, %c0_i32_0 : i32, i32
  }
  func.func @transform_7(%arg0: i32) -> (i32, i32) {
    %c0_i32 = arith.constant 0 : i32
    %c0_i32_0 = arith.constant 0 : i32
    %c0_i32_1 = arith.constant 0 : i32
    return %c0_i32, %c0_i32_0 : i32, i32
  }
  func.func @transform_8(%arg0: i32) -> (i32, i32) {
    %c0_i32 = arith.constant 0 : i32
    %c0_i32_0 = arith.constant 0 : i32
    %c0_i32_1 = arith.constant 0 : i32
    return %c0_i32, %c0_i32_0 : i32, i32
  }
  func.func @transform_9(%arg0: i32) -> (i32, i32) {
    %c0_i32 = arith.constant 0 : i32
    %c0_i32_0 = arith.constant 0 : i32
    return %arg0, %c0_i32 : i32, i32
  }
}

</mosaic_0001>

<llo_original>
// kernel: tpu_custom_call.1
$region0: #{tpu_custom_call.1}
  #allocation0 [shape = 'u32[]', space=smem, size = 0x4, offset = 0x4, fixed_abs, tag = 'smem constant byte address 0x4 - core index']
  #allocation1 [shape = 'u32[72,128]{1,0:T(1,128)}', space=vmem, size = 0x9000, scoped, tag = 'internal scratch']
  %s0 = inlined_call_operand.hbm [shape: f32[16,32], index: 0, kind: input, shape index: {}]
  %s1 = inlined_call_operand.hbm [shape: f32[2], index: 1, kind: input, shape index: {}]
  %s2 = inlined_call_operand.hbm [shape: f32[16,32], index: 2, kind: input, shape index: {}]
  %s3 = inlined_call_operand.hbm [shape: f32[16,32], index: 3, kind: input, shape index: {}]
  %s4 = inlined_call_operand.vmem [shape: f32[32,32], index: 4, kind: input, shape index: {}]
  %s5 = inlined_call_operand.vmem [shape: bf16[32,160], index: 5, kind: input, shape index: {}]
  %s6 = inlined_call_operand.hbm [shape: bf16[32,32], index: 6, kind: input, shape index: {}]
  %s7 = inlined_call_operand.hbm [shape: bf16[32,192], index: 7, kind: input, shape index: {}]
  %s8 = inlined_call_operand.vmem [shape: bf16[96,32], index: 8, kind: input, shape index: {}]
  %s9 = inlined_call_operand.hbm [shape: f32[16,32], index: 9, kind: output, shape index: {}]
  %s10 = sld [smem:[#allocation0]]
  $region70: #{tpu_custom_call.1} parent=0
    _
  %s12 = ssub.s32 1, %s10
  %s13 = scalar_select 0, %s12, %s10
  $region1: #{tpu_custom_call.1} parent=0
    #allocation2 [shape = 'u8[8192]{0}', space=vmem, size = 0x2000, scoped, tag = 'input window, operand 0, single buffered']
    #allocation3 [shape = 's32[1]{0}', space=sflag, size = 0x4, scoped, tag = 'scoped memory for tpu_custom_call.1']
    #allocation4 [shape = 's32[1]{0}', space=sflag, size = 0x4, scoped, tag = 'scoped memory for tpu_custom_call.1']
    #allocation5 [shape = 's32[1]{0}', space=sflag, size = 0x4, scoped, tag = 'scoped memory for tpu_custom_call.1']
    #allocation6 [shape = 'u8[512]{0}', space=smem, size = 0x200, scoped, tag = 'input window, operand 1, single buffered']
    #allocation7 [shape = 'u8[8192]{0}', space=vmem, size = 0x2000, scoped, tag = 'input window, operand 2, single buffered']
    #allocation8 [shape = 's32[1]{0}', space=sflag, size = 0x4, scoped, tag = 'scoped memory for tpu_custom_call.1']
    #allocation9 [shape = 'u8[8192]{0}', space=vmem, size = 0x2000, scoped, tag = 'input window, operand 3, single buffered']
    #allocation10 [shape = 'u8[8192]{0}', space=vmem, size = 0x2000, scoped, tag = 'input window, operand 6, single buffered']
    #allocation11 [shape = 's32[1]{0}', space=sflag, size = 0x4, scoped, tag = 'scoped memory for tpu_custom_call.1']
    #allocation12 [shape = 'u8[16384]{0}', space=vmem, size = 0x4000, scoped, tag = 'input window, operand 7, single buffered']
    #allocation13 [shape = 'u8[8192]{0}', space=vmem, size = 0x2000, scoped, tag = 'output window, operand 0, single buffered']
    %14 = vsyncpa [#allocation3], 0
    %15 = vsyncpa [#allocation5], 0
    %16 = vsyncpa [#allocation8], 0
    %17 = vsyncpa [#allocation11], 0
    %18 = vsyncpa [#allocation4], 0
    // Predicated region
    $region2: #{tpu_custom_call.1} parent=1 // pred_check
      _
    $region3: #{tpu_custom_call.1} parent=1 // pred_check_branch
      %20 = sbr.rel (0) target = $region5
    $region4: #{tpu_custom_call.1} parent=1 // pred_region
      %22 = vsyncadd [#allocation3], 0
      %s23 = sshll.u32 %s0, 4
      %s24 = int_to_ptr.hbm [resolvable:$true] %s23
      %s25 = sshll.u32 [#allocation2], 4
      %s26 = int_to_ptr.vmem [resolvable:$true] %s25
      %31 = dma.hbm_to_vmem [thread:$0]  %s24, 256, %s26, [#allocation3], 128, 128, 8
    $region5: #{tpu_custom_call.1} parent=1 // pred_fallthru
      _
    // Predicated region
    $region6: #{tpu_custom_call.1} parent=1 // pred_check
      _
    $region7: #{tpu_custom_call.1} parent=1 // pred_check_branch
      %33 = sbr.rel (0) target = $region9
    $region8: #{tpu_custom_call.1} parent=1 // pred_region
      %35 = vsyncadd [#allocation5], 0
      %s37 = sshll.u32 %s1, 4
      %s38 = int_to_ptr.hbm [resolvable:$true] %s37
      %40 = dma.hbm_to_smem %s38, 16, [#allocation6], [#allocation5]
    $region9: #{tpu_custom_call.1} parent=1 // pred_fallthru
      _
    // Predicated region
    $region10: #{tpu_custom_call.1} parent=1 // pred_check
      _
    $region11: #{tpu_custom_call.1} parent=1 // pred_check_branch
      %42 = sbr.rel (0) target = $region13
    $region12: #{tpu_custom_call.1} parent=1 // pred_region
      %44 = vsyncadd [#allocation8], 0
      %s45 = sshll.u32 %s2, 4
      %s46 = int_to_ptr.hbm [resolvable:$true] %s45
      %s47 = sshll.u32 [#allocation7], 4
      %s48 = int_to_ptr.vmem [resolvable:$true] %s47
      %53 = dma.hbm_to_vmem [thread:$0]  %s46, 256, %s48, [#allocation8], 128, 128, 8
    $region13: #{tpu_custom_call.1} parent=1 // pred_fallthru
      _
    // Predicated region
    $region14: #{tpu_custom_call.1} parent=1 // pred_check
      _
    $region15: #{tpu_custom_call.1} parent=1 // pred_check_branch
      %55 = sbr.rel (0) target = $region17
    $region16: #{tpu_custom_call.1} parent=1 // pred_region
      %57 = vsyncadd [#allocation8], 0
      %s58 = sshll.u32 %s3, 4
      %s59 = int_to_ptr.hbm [resolvable:$true] %s58
      %s60 = sshll.u32 [#allocation9], 4
      %s61 = int_to_ptr.vmem [resolvable:$true] %s60
      %66 = dma.hbm_to_vmem [thread:$0]  %s59, 256, %s61, [#allocation8], 128, 128, 8
    $region17: #{tpu_custom_call.1} parent=1 // pred_fallthru
      _
    // Predicated region
    $region18: #{tpu_custom_call.1} parent=1 // pred_check
      _
    $region19: #{tpu_custom_call.1} parent=1 // pred_check_branch
      %68 = sbr.rel (0) target = $region21
    $region20: #{tpu_custom_call.1} parent=1 // pred_region
      _
    $region21: #{tpu_custom_call.1} parent=1 // pred_fallthru
      _
    // Predicated region
    $region22: #{tpu_custom_call.1} parent=1 // pred_check
      _
    $region23: #{tpu_custom_call.1} parent=1 // pred_check_branch
      %70 = sbr.rel (0) target = $region25
    $region24: #{tpu_custom_call.1} parent=1 // pred_region
      _
    $region25: #{tpu_custom_call.1} parent=1 // pred_fallthru
      _
    // Predicated region
    $region26: #{tpu_custom_call.1} parent=1 // pred_check
      _
    $region27: #{tpu_custom_call.1} parent=1 // pred_check_branch
      %72 = sbr.rel (0) target = $region29
    $region28: #{tpu_custom_call.1} parent=1 // pred_region
      %74 = vsyncadd [#allocation11], 0
      %s75 = sshll.u32 %s6, 4
      %s76 = int_to_ptr.hbm [resolvable:$true] %s75
      %s77 = sshll.u32 [#allocation10], 4
      %s78 = int_to_ptr.vmem [resolvable:$true] %s77
      %83 = dma.hbm_to_vmem [thread:$0]  %s76, 256, %s78, [#allocation11], 64, 64, 4
    $region29: #{tpu_custom_call.1} parent=1 // pred_fallthru
      _
    // Predicated region
    $region30: #{tpu_custom_call.1} parent=1 // pred_check
      _
    $region31: #{tpu_custom_call.1} parent=1 // pred_check_branch
      %85 = sbr.rel (0) target = $region33
    $region32: #{tpu_custom_call.1} parent=1 // pred_region
      %87 = vsyncadd [#allocation11], 0
      %s88 = sshll.u32 %s7, 4
      %s89 = int_to_ptr.hbm [resolvable:$true] %s88
      %s90 = sshll.u32 [#allocation12], 4
      %s91 = int_to_ptr.vmem [resolvable:$true] %s90
      %96 = dma.hbm_to_vmem [thread:$0]  %s89, 512, %s91, [#allocation11], 128, 128, 8
    $region33: #{tpu_custom_call.1} parent=1 // pred_fallthru
      _
    // Predicated region
    $region34: #{tpu_custom_call.1} parent=1 // pred_check
      _
    $region35: #{tpu_custom_call.1} parent=1 // pred_check_branch
      %98 = sbr.rel (0) target = $region37
    $region36: #{tpu_custom_call.1} parent=1 // pred_region
      _
    $region37: #{tpu_custom_call.1} parent=1 // pred_fallthru
      _
    // Predicated region
    $region38: #{tpu_custom_call.1} parent=1 // pred_check
      _
    $region39: #{tpu_custom_call.1} parent=1 // pred_check_branch
      %100 = sbr.rel (0) target = $region41
    $region40: #{tpu_custom_call.1} parent=1 // pred_region
      %102 = dma.done [#allocation3], 256
    $region41: #{tpu_custom_call.1} parent=1 // pred_fallthru
      _
    // Predicated region
    $region42: #{tpu_custom_call.1} parent=1 // pred_check
      _
    $region43: #{tpu_custom_call.1} parent=1 // pred_check_branch
      %104 = sbr.rel (0) target = $region45
    $region44: #{tpu_custom_call.1} parent=1 // pred_region
      %106 = dma.done [#allocation5], 16
    $region45: #{tpu_custom_call.1} parent=1 // pred_fallthru
      _
    // Predicated region
    $region46: #{tpu_custom_call.1} parent=1 // pred_check
      _
    $region47: #{tpu_custom_call.1} parent=1 // pred_check_branch
      %108 = sbr.rel (0) target = $region49
    $region48: #{tpu_custom_call.1} parent=1 // pred_region
      %110 = dma.done [#allocation8], 256
    $region49: #{tpu_custom_call.1} parent=1 // pred_fallthru
      _
    // Predicated region
    $region50: #{tpu_custom_call.1} parent=1 // pred_check
      _
    $region51: #{tpu_custom_call.1} parent=1 // pred_check_branch
      %112 = sbr.rel (0) target = $region53
    $region52: #{tpu_custom_call.1} parent=1 // pred_region
      %114 = dma.done [#allocation8], 256
    $region53: #{tpu_custom_call.1} parent=1 // pred_fallthru
      _
    // Predicated region
    $region54: #{tpu_custom_call.1} parent=1 // pred_check
      _
    $region55: #{tpu_custom_call.1} parent=1 // pred_check_branch
      %116 = sbr.rel (0) target = $region57
    $region56: #{tpu_custom_call.1} parent=1 // pred_region
      %118 = dma.done [#allocation11], 256
    $region57: #{tpu_custom_call.1} parent=1 // pred_fallthru
      _
    // Predicated region
    $region58: #{tpu_custom_call.1} parent=1 // pred_check
      _
    $region59: #{tpu_custom_call.1} parent=1 // pred_check_branch
      %120 = sbr.rel (0) target = $region61
    $region60: #{tpu_custom_call.1} parent=1 // pred_region
      %122 = dma.done [#allocation11], 512
    $region61: #{tpu_custom_call.1} parent=1 // pred_fallthru
      _
    %123 = sfence
    %v125 = vld [vmem:[#allocation2] sm:$0xff]
    %v126 = vld [vmem:[#allocation2 + $0x8] sm:$0xff]
    %s127 = sld [smem:[#allocation6]]
    %v128 = vstv %s127
    %v129 = vmul.f32 %v128, %v125
    %v130 = vmul.f32 %v128, %v126
    %v131 = vtanh.pop %v129
    %v132 = vtanh.pop %v130
    %v133 = vpack.c.bf16 %v132, %v131
    %v134 = vld [vmem:[%s5] sm:$0xff]
    %v135 = vld [vmem:[%s5 + $0x8] sm:$0xff]
    %v136 = vld [vmem:[%s5 + $0x10] sm:$0xff]
    %v137 = vld [vmem:[%s5 + $0x18] sm:$0xff]
    %v142 = vunpack.c.l.b16 %v134
    %v143 = vunpack.c.h.b16 %v134
    %v144 = vunpack.c.l.b16 %v135
    %v145 = vunpack.c.h.b16 %v135
    %v146 = vunpack.c.l.b16 %v136
    %v147 = vunpack.c.h.b16 %v136
    %v148 = vunpack.c.l.b16 %v137
    %v149 = vunpack.c.h.b16 %v137
    %v150 = vpack.c.b16 %v144, %v142
    %v151 = vpack.c.b16 %v145, %v143
    %v152 = vpack.c.b16 %v148, %v146
    %v153 = vpack.c.b16 %v149, %v147
    %vm158 = vcmask 261120
    %v160 = vsel %vm158, %v133, 0
    %162 = vmatpush.bf16.msra.mxu0 0
    %163 = vmatpush.bf16.msra.mxu0 0
    %164 = vmatpush.bf16.msra.mxu0 0
    %165 = vmatpush.bf16.msra.mxu0 0
    %166 = vmatpush.bf16.msra.mxu0 0
    %167 = vmatpush.bf16.msra.mxu0 0
    %168 = vmatpush.bf16.msra.mxu0 %v152
    %169 = vmatpush.bf16.msra.mxu0 %v150
    %170 = vmatmul.bf16.gmra.mxu0 %v160
    %v171 = vpop.f32.mrf.mxu0
    %v172 = vadd.f32 0.0, %v171
    %v173 = vpop.f32.mrf.mxu0
    %v174 = vadd.f32 0.0, %v173
    %175 = vdwg.mxu0
    %176 = vmatpush.bf16.msra.mxu0 0
    %177 = vmatpush.bf16.msra.mxu0 0
    %178 = vmatpush.bf16.msra.mxu0 0
    %179 = vmatpush.bf16.msra.mxu0 0
    %180 = vmatpush.bf16.msra.mxu0 0
    %181 = vmatpush.bf16.msra.mxu0 0
    %182 = vmatpush.bf16.msra.mxu0 %v153
    %183 = vmatpush.bf16.msra.mxu0 %v151
    %184 = vmatmul.bf16.gmra.mxu0 %v160
    %v185 = vpop.f32.mrf.mxu0
    %v186 = vadd.f32 0.0, %v185
    %v187 = vpop.f32.mrf.mxu0
    %v188 = vadd.f32 0.0, %v187
    %189 = vdwg.mxu0
    %v190 = vld [vmem:[#allocation7] sm:$0xff]
    %v191 = vld [vmem:[#allocation7 + $0x8] sm:$0xff]
    %v192 = vld [vmem:[#allocation9] sm:$0xff]
    %v193 = vld [vmem:[#allocation9 + $0x8] sm:$0xff]
    %v194 = vmul.f32 %v172, %v190
    %v195 = vmul.f32 %v174, %v191
    %198 = vrot.lane.b32.xlu0 %v192, 96
    %v199 = vpop.permute.xlu0 %198
    %200 = vrot.lane.b32.xlu0 %v193, 96
    %v201 = vpop.permute.xlu0 %200
    %v204 = vmul.f32 %v172, %v199
    %v205 = vmul.f32 %v174, %v201
    %208 = vrot.lane.b32.xlu0 %v204, 32
    %v209 = vpop.permute.xlu0 %208
    %210 = vrot.lane.b32.xlu0 %v205, 32
    %v211 = vpop.permute.xlu0 %210
    %v214 = vadd.f32 %v194, %v209
    %v215 = vadd.f32 %v195, %v211
    %218 = vrot.lane.b32.xlu0 %v190, 32
    %v219 = vpop.permute.xlu0 %218
    %220 = vrot.lane.b32.xlu0 %v191, 32
    %v221 = vpop.permute.xlu0 %220
    %v224 = vmul.f32 %v172, %v219
    %v225 = vmul.f32 %v174, %v221
    %v226 = vmul.f32 %v186, %v192
    %v227 = vmul.f32 %v188, %v193
    %230 = vrot.lane.b32.xlu0 %v226, 32
    %v231 = vpop.permute.xlu0 %230
    %232 = vrot.lane.b32.xlu0 %v227, 32
    %v233 = vpop.permute.xlu0 %232
    %v236 = vadd.f32 %v224, %v231
    %v237 = vadd.f32 %v225, %v233
    %v238 = vld [vmem:[%s4] sm:$0xff]
    %v239 = vld [vmem:[%s4 + $0x8] sm:$0xff]
    %v240 = vld [vmem:[%s4 + $0x10] sm:$0xff]
    %v241 = vld [vmem:[%s4 + $0x18] sm:$0xff]
    %v242 = vpack.c.bf16 %v214, %v214
    %247 = vrot.lane.b32.xlu0 %v238, 32
    %v248 = vpop.permute.xlu0 %247
    %249 = vrot.lane.b32.xlu0 %v239, 32
    %v250 = vpop.permute.xlu0 %249
    %251 = vrot.lane.b32.xlu0 %v240, 32
    %v252 = vpop.permute.xlu0 %251
    %253 = vrot.lane.b32.xlu0 %v241, 32
    %v254 = vpop.permute.xlu0 %253
    %v259 = vmul.f32 %v236, %v248
    %v260 = vmul.f32 %v236, %v250
    %v261 = vmul.f32 %v236, %v252
    %v262 = vmul.f32 %v236, %v254
    %v263 = vpack.c.bf16 %v260, %v259
    %v264 = vpack.c.bf16 %v262, %v261
    %265 = vrot.lane.b32.xlu0 %v238, 64
    %v266 = vpop.permute.xlu0 %265
    %267 = vrot.lane.b32.xlu0 %v239, 64
    %v268 = vpop.permute.xlu0 %267
    %269 = vrot.lane.b32.xlu0 %v240, 64
    %v270 = vpop.permute.xlu0 %269
    %271 = vrot.lane.b32.xlu0 %v241, 64
    %v272 = vpop.permute.xlu0 %271
    %v277 = vmul.f32 %v172, %v266
    %v278 = vmul.f32 %v172, %v268
    %v279 = vmul.f32 %v172, %v270
    %v280 = vmul.f32 %v172, %v272
    %v281 = vpack.c.bf16 %v278, %v277
    %v282 = vpack.c.bf16 %v280, %v279
    %285 = vrot.lane.b32.xlu0 %v263, 96
    %v286 = vpop.permute.xlu0 %285
    %287 = vrot.lane.b32.xlu0 %v264, 96
    %v288 = vpop.permute.xlu0 %287
    %v290 = vsel %vm158, %v242, 0
    %v293 = vsel %vm158, %v286, 0
    %v296 = vsel %vm158, %v288, 0
    %298 = vmatpush.bf16.xpose.msra.mxu0 0
    %299 = vmatpush.bf16.xpose.msra.mxu0 0
    %300 = vmatpush.bf16.xpose.msra.mxu0 0
    %301 = vmatpush.bf16.xpose.msra.mxu0 0
    %302 = vmatpush.bf16.xpose.msra.mxu0 0
    %303 = vmatpush.bf16.xpose.msra.mxu0 0
    %304 = vmatpush.bf16.xpose.msra.mxu0 %v296
    %305 = vmatpush.bf16.xpose.msra.mxu0 %v293
    %306 = vmatmul.bf16.gmra.mxu0 %v290
    %v307 = vpop.f32.mrf.mxu0
    %v308 = vadd.f32 0.0, %v307
    %v309 = vpop.f32.mrf.mxu0
    %310 = vdwg.mxu0
    %vm311 = vcmask 64512
    %v312 = vsel %vm311, %v308, -inf
    %313 = vmax.xlane.f32.xlu0 %v312
    %v314 = vpop.xlane.xlu0 %313
    %v315 = vsub.f32 %v308, %v314
    %v316 = vmul.f32 %v315, 1.442695
    %v317 = vpow.pop %v316
    %v318 = vsel %vm311, %v317, 0.0
    %319 = vadd.xlane.f32.xlu0 %v318
    %v320 = vpop.xlane.xlu0 %319
    %v321 = vrcp.pop %v320
    %v322 = vmul.f32 %v317, %v321
    %vm323 = vcmask 130112
    %v324 = vsel %vm323, %v308, -inf
    %325 = vmax.xlane.f32.xlu0 %v324
    %v326 = vpop.xlane.xlu0 %325
    %v327 = vsub.f32 %v308, %v326
    %v328 = vmul.f32 %v327, 1.442695
    %v329 = vpow.pop %v328
    %331 = vrot.lane.b32.xlu0 %v329, 120
    %v332 = vpop.permute.xlu0 %331
    %v334 = vsel %vm311, %v332, 0.0
    %335 = vadd.xlane.f32.xlu0 %v334
    %v336 = vpop.xlane.xlu0 %335
    %v337 = vrcp.pop %v336
    %v338 = vmul.f32 %v329, %v337
    %vm339 = vcmask 195712
    %v340 = vsel %vm339, %v308, -inf
    %341 = vmax.xlane.f32.xlu0 %v340
    %v342 = vpop.xlane.xlu0 %341
    %v343 = vsub.f32 %v308, %v342
    %v344 = vmul.f32 %v343, 1.442695
    %v345 = vpow.pop %v344
    %347 = vrot.lane.b32.xlu0 %v345, 112
    %v348 = vpop.permute.xlu0 %347
    %v350 = vsel %vm311, %v348, 0.0
    %351 = vadd.xlane.f32.xlu0 %v350
    %v352 = vpop.xlane.xlu0 %351
    %v353 = vrcp.pop %v352
    %v354 = vmul.f32 %v345, %v353
    %vm355 = vcmask 261312
    %v356 = vsel %vm355, %v308, -inf
    %357 = vmax.xlane.f32.xlu0 %v356
    %v358 = vpop.xlane.xlu0 %357
    %v359 = vsub.f32 %v308, %v358
    %v360 = vmul.f32 %v359, 1.442695
    %v361 = vpow.pop %v360
    %363 = vrot.lane.b32.xlu0 %v361, 104
    %v364 = vpop.permute.xlu0 %363
    %v366 = vsel %vm311, %v364, 0.0
    %367 = vadd.xlane.f32.xlu0 %v366
    %v368 = vpop.xlane.xlu0 %367
    %v369 = vrcp.pop %v368
    %v370 = vmul.f32 %v361, %v369
    %v371 = vsel %vm311, %v322, %v338
    %vm372 = vcmask 130048
    %v373 = vsel %vm372, %v371, %v354
    %vm374 = vcmask 195584
    %v375 = vsel %vm374, %v373, %v370
    %v376 = vpack.c.bf16 %v375, %v375
    %379 = vrot.lane.b32.xlu0 %v281, 64
    %v380 = vpop.permute.xlu0 %379
    %381 = vrot.lane.b32.xlu0 %v282, 64
    %v382 = vpop.permute.xlu0 %381
    %v386 = vsel %vm158, %v376, 0
    %388 = vmatpush.bf16.msra.mxu0 0
    %389 = vmatpush.bf16.msra.mxu0 0
    %390 = vmatpush.bf16.msra.mxu0 0
    %391 = vmatpush.bf16.msra.mxu0 0
    %392 = vmatpush.bf16.msra.mxu0 0
    %393 = vmatpush.bf16.msra.mxu0 0
    %394 = vmatpush.bf16.msra.mxu0 %v382
    %395 = vmatpush.bf16.msra.mxu0 %v380
    %396 = vmatmul.bf16.gmra.mxu0 %v386
    %v397 = vpop.f32.mrf.mxu0
    %v398 = vadd.f32 0.0, %v397
    %v399 = vpop.f32.mrf.mxu0
    %400 = vdwg.mxu0
    %v401 = vpack.c.bf16 %v215, %v215
    %v402 = vmul.f32 %v237, %v248
    %v403 = vmul.f32 %v237, %v250
    %v404 = vmul.f32 %v237, %v252
    %v405 = vmul.f32 %v237, %v254
    %v406 = vpack.c.bf16 %v403, %v402
    %v407 = vpack.c.bf16 %v405, %v404
    %v408 = vmul.f32 %v174, %v266
    %v409 = vmul.f32 %v174, %v268
    %v410 = vmul.f32 %v174, %v270
    %v411 = vmul.f32 %v174, %v272
    %v412 = vpack.c.bf16 %v409, %v408
    %v413 = vpack.c.bf16 %v411, %v410
    %416 = vrot.lane.b32.xlu0 %v406, 96
    %v417 = vpop.permute.xlu0 %416
    %418 = vrot.lane.b32.xlu0 %v407, 96
    %v419 = vpop.permute.xlu0 %418
    %v421 = vsel %vm158, %v401, 0
    %v424 = vsel %vm158, %v417, 0
    %v427 = vsel %vm158, %v419, 0
    %429 = vmatpush.bf16.xpose.msra.mxu0 0
    %430 = vmatpush.bf16.xpose.msra.mxu0 0
    %431 = vmatpush.bf16.xpose.msra.mxu0 0
    %432 = vmatpush.bf16.xpose.msra.mxu0 0
    %433 = vmatpush.bf16.xpose.msra.mxu0 0
    %434 = vmatpush.bf16.xpose.msra.mxu0 0
    %435 = vmatpush.bf16.xpose.msra.mxu0 %v427
    %436 = vmatpush.bf16.xpose.msra.mxu0 %v424
    %437 = vmatmul.bf16.gmra.mxu0 %v421
    %v438 = vpop.f32.mrf.mxu0
    %v439 = vadd.f32 0.0, %v438
    %v440 = vpop.f32.mrf.mxu0
    %441 = vdwg.mxu0
    %v442 = vsel %vm311, %v439, -inf
    %443 = vmax.xlane.f32.xlu0 %v442
    %v444 = vpop.xlane.xlu0 %443
    %v445 = vsub.f32 %v439, %v444
    %v446 = vmul.f32 %v445, 1.442695
    %v447 = vpow.pop %v446
    %v448 = vsel %vm311, %v447, 0.0
    %449 = vadd.xlane.f32.xlu0 %v448
    %v450 = vpop.xlane.xlu0 %449
    %v451 = vrcp.pop %v450
    %v452 = vmul.f32 %v447, %v451
    %v453 = vsel %vm323, %v439, -inf
    %454 = vmax.xlane.f32.xlu0 %v453
    %v455 = vpop.xlane.xlu0 %454
    %v456 = vsub.f32 %v439, %v455
    %v457 = vmul.f32 %v456, 1.442695
    %v458 = vpow.pop %v457
    %460 = vrot.lane.b32.xlu0 %v458, 120
    %v461 = vpop.permute.xlu0 %460
    %v463 = vsel %vm311, %v461, 0.0
    %464 = vadd.xlane.f32.xlu0 %v463
    %v465 = vpop.xlane.xlu0 %464
    %v466 = vrcp.pop %v465
    %v467 = vmul.f32 %v458, %v466
    %v468 = vsel %vm339, %v439, -inf
    %469 = vmax.xlane.f32.xlu0 %v468
    %v470 = vpop.xlane.xlu0 %469
    %v471 = vsub.f32 %v439, %v470
    %v472 = vmul.f32 %v471, 1.442695
    %v473 = vpow.pop %v472
    %475 = vrot.lane.b32.xlu0 %v473, 112
    %v476 = vpop.permute.xlu0 %475
    %v478 = vsel %vm311, %v476, 0.0
    %479 = vadd.xlane.f32.xlu0 %v478
    %v480 = vpop.xlane.xlu0 %479
    %v481 = vrcp.pop %v480
    %v482 = vmul.f32 %v473, %v481
    %v483 = vsel %vm355, %v439, -inf
    %484 = vmax.xlane.f32.xlu0 %v483
    %v485 = vpop.xlane.xlu0 %484
    %v486 = vsub.f32 %v439, %v485
    %v487 = vmul.f32 %v486, 1.442695
    %v488 = vpow.pop %v487
    %490 = vrot.lane.b32.xlu0 %v488, 104
    %v491 = vpop.permute.xlu0 %490
    %v493 = vsel %vm311, %v491, 0.0
    %494 = vadd.xlane.f32.xlu0 %v493
    %v495 = vpop.xlane.xlu0 %494
    %v496 = vrcp.pop %v495
    %v497 = vmul.f32 %v488, %v496
    %v498 = vsel %vm311, %v452, %v467
    %v499 = vsel %vm372, %v498, %v482
    %v500 = vsel %vm374, %v499, %v497
    %v501 = vpack.c.bf16 %v500, %v500
    %504 = vrot.lane.b32.xlu0 %v412, 64
    %v505 = vpop.permute.xlu0 %504
    %506 = vrot.lane.b32.xlu0 %v413, 64
    %v507 = vpop.permute.xlu0 %506
    %v511 = vsel %vm158, %v501, 0
    %513 = vmatpush.bf16.msra.mxu0 0
    %514 = vmatpush.bf16.msra.mxu0 0
    %515 = vmatpush.bf16.msra.mxu0 0
    %516 = vmatpush.bf16.msra.mxu0 0
    %517 = vmatpush.bf16.msra.mxu0 0
    %518 = vmatpush.bf16.msra.mxu0 0
    %519 = vmatpush.bf16.msra.mxu0 %v507
    %520 = vmatpush.bf16.msra.mxu0 %v505
    %521 = vmatmul.bf16.gmra.mxu0 %v511
    %v522 = vpop.f32.mrf.mxu0
    %v523 = vadd.f32 0.0, %v522
    %v524 = vpop.f32.mrf.mxu0
    %525 = vdwg.mxu0
    %v526 = vpack.c.bf16 %v523, %v398
    %v527 = vld [vmem:[#allocation10] sm:$0xf]
    %v528 = vld [vmem:[#allocation10 + $0x4] sm:$0xf]
    %v529 = vld [vmem:[#allocation10 + $0x8] sm:$0xf]
    %v530 = vld [vmem:[#allocation10 + $0xc] sm:$0xf]
    %v535 = vunpack.c.l.b16 %v527
    %v536 = vunpack.c.l.b16 %v528
    %v537 = vunpack.c.l.b16 %v529
    %v538 = vunpack.c.l.b16 %v530
    %v539 = vpack.c.b16 %v536, %v535
    %v540 = vpack.c.b16 %v538, %v537
    %v544 = vsel %vm158, %v526, 0
    %546 = vmatpush.bf16.msra.mxu0 0
    %547 = vmatpush.bf16.msra.mxu0 0
    %548 = vmatpush.bf16.msra.mxu0 0
    %549 = vmatpush.bf16.msra.mxu0 0
    %550 = vmatpush.bf16.msra.mxu0 0
    %551 = vmatpush.bf16.msra.mxu0 0
    %552 = vmatpush.bf16.msra.mxu0 %v540
    %553 = vmatpush.bf16.msra.mxu0 %v539
    %554 = vmatmul.bf16.gmra.mxu0 %v544
    %v555 = vpop.f32.mrf.mxu0
    %v556 = vadd.f32 0.0, %v555
    %v557 = vpop.f32.mrf.mxu0
    %v558 = vadd.f32 0.0, %v557
    %559 = vdwg.mxu0
    %v560 = vadd.f32 %v125, %v556
    %v561 = vadd.f32 %v126, %v558
    %s562 = sld [smem:[#allocation6 + $0x1]]
    %v563 = vstv %s562
    %v564 = vmul.f32 %v563, %v560
    %v565 = vmul.f32 %v563, %v561
    %v566 = vtanh.pop %v564
    %v567 = vtanh.pop %v565
    %v568 = vpack.c.bf16 %v567, %v566
    %v569 = vld [vmem:[#allocation12] sm:$0xff]
    %v570 = vld [vmem:[#allocation12 + $0x8] sm:$0xff]
    %v571 = vld [vmem:[#allocation12 + $0x10] sm:$0xff]
    %v572 = vld [vmem:[#allocation12 + $0x18] sm:$0xff]
    %v577 = vunpack.c.l.b16 %v569
    %v578 = vunpack.c.h.b16 %v569
    %v579 = vunpack.c.l.b16 %v570
    %v580 = vunpack.c.h.b16 %v570
    %v581 = vunpack.c.l.b16 %v571
    %v582 = vunpack.c.h.b16 %v571
    %v583 = vunpack.c.l.b16 %v572
    %v584 = vunpack.c.h.b16 %v572
    %v585 = vpack.c.b16 %v579, %v577
    %v586 = vpack.c.b16 %v580, %v578
    %v587 = vpack.c.b16 %v583, %v581
    %v588 = vpack.c.b16 %v584, %v582
    %v594 = vsel %vm158, %v568, 0
    %596 = vmatpush.bf16.msra.mxu0 0
    %597 = vmatpush.bf16.msra.mxu0 0
    %598 = vmatpush.bf16.msra.mxu0 0
    %599 = vmatpush.bf16.msra.mxu0 0
    %600 = vmatpush.bf16.msra.mxu0 0
    %601 = vmatpush.bf16.msra.mxu0 0
    %602 = vmatpush.bf16.msra.mxu0 %v587
    %603 = vmatpush.bf16.msra.mxu0 %v585
    %604 = vmatmul.bf16.gmra.mxu0 %v594
    %v605 = vpop.f32.mrf.mxu0
    %v606 = vadd.f32 0.0, %v605
    %v607 = vpop.f32.mrf.mxu0
    %v608 = vadd.f32 0.0, %v607
    %609 = vdwg.mxu0
    %610 = vmatpush.bf16.msra.mxu0 0
    %611 = vmatpush.bf16.msra.mxu0 0
    %612 = vmatpush.bf16.msra.mxu0 0
    %613 = vmatpush.bf16.msra.mxu0 0
    %614 = vmatpush.bf16.msra.mxu0 0
    %615 = vmatpush.bf16.msra.mxu0 0
    %616 = vmatpush.bf16.msra.mxu0 %v588
    %617 = vmatpush.bf16.msra.mxu0 %v586
    %618 = vmatmul.bf16.gmra.mxu0 %v594
    %v619 = vpop.f32.mrf.mxu0
    %v620 = vadd.f32 0.0, %v619
    %v621 = vpop.f32.mrf.mxu0
    %v622 = vadd.f32 0.0, %v621
    %623 = vdwg.mxu0
    %v624 = vmul.f32 %v606, 0.5
    %v625 = vmul.f32 %v608, 0.5
    %v626 = vtanh.pop %v624
    %v627 = vtanh.pop %v625
    %v628 = vadd.f32 %v626, 1.0
    %v629 = vadd.f32 %v627, 1.0
    %v630 = vmul.f32 %v624, %v628
    %v631 = vmul.f32 %v625, %v629
    %636 = vrot.lane.b32.xlu0 %v606, 32
    %v637 = vpop.permute.xlu0 %636
    %638 = vrot.lane.b32.xlu0 %v620, 32
    %v639 = vpop.permute.xlu0 %638
    %640 = vrot.lane.b32.xlu0 %v608, 32
    %v641 = vpop.permute.xlu0 %640
    %642 = vrot.lane.b32.xlu0 %v622, 32
    %v643 = vpop.permute.xlu0 %642
    %v644 = vsel %vm158, %v637, %v639
    %v645 = vsel %vm158, %v641, %v643
    %v648 = vmul.f32 %v630, %v644
    %v649 = vmul.f32 %v631, %v645
    %v650 = vpack.c.bf16 %v649, %v648
    %v651 = vld [vmem:[%s8] sm:$0xf]
    %v652 = vld [vmem:[%s8 + $0x4] sm:$0xf]
    %v653 = vld [vmem:[%s8 + $0x8] sm:$0xf]
    %v654 = vld [vmem:[%s8 + $0xc] sm:$0xf]
    %v655 = vld [vmem:[%s8 + $0x10] sm:$0xf]
    %v656 = vld [vmem:[%s8 + $0x14] sm:$0xf]
    %v657 = vld [vmem:[%s8 + $0x18] sm:$0xf]
    %v658 = vld [vmem:[%s8 + $0x1c] sm:$0xf]
    %v659 = vld [vmem:[%s8 + $0x20] sm:$0xf]
    %v660 = vld [vmem:[%s8 + $0x24] sm:$0xf]
    %v661 = vld [vmem:[%s8 + $0x28] sm:$0xf]
    %v662 = vld [vmem:[%s8 + $0x2c] sm:$0xf]
    %v675 = vunpack.c.l.b16 %v651
    %v676 = vunpack.c.l.b16 %v652
    %v677 = vunpack.c.l.b16 %v653
    %v678 = vunpack.c.l.b16 %v654
    %v679 = vunpack.c.l.b16 %v655
    %v680 = vunpack.c.l.b16 %v656
    %v681 = vunpack.c.l.b16 %v657
    %v682 = vunpack.c.l.b16 %v658
    %v683 = vunpack.c.l.b16 %v659
    %v684 = vunpack.c.l.b16 %v660
    %v685 = vunpack.c.l.b16 %v661
    %v686 = vunpack.c.l.b16 %v662
    %v687 = vpack.c.b16 %v676, %v675
    %v688 = vpack.c.b16 %v678, %v677
    %v689 = vpack.c.b16 %v680, %v679
    %v690 = vpack.c.b16 %v682, %v681
    %v691 = vpack.c.b16 %v684, %v683
    %v692 = vpack.c.b16 %v686, %v685
    %vm699 = vcmask 785408
    %v701 = vsel %vm699, %v650, 0
    %703 = vmatpush.bf16.msra.mxu0 0
    %704 = vmatpush.bf16.msra.mxu0 0
    %705 = vmatpush.bf16.msra.mxu0 %v692
    %706 = vmatpush.bf16.msra.mxu0 %v691
    %707 = vmatpush.bf16.msra.mxu0 %v690
    %708 = vmatpush.bf16.msra.mxu0 %v689
    %709 = vmatpush.bf16.msra.mxu0 %v688
    %710 = vmatpush.bf16.msra.mxu0 %v687
    %711 = vmatmul.bf16.gmra.mxu0 %v701
    %v712 = vpop.f32.mrf.mxu0
    %v713 = vadd.f32 0.0, %v712
    %v714 = vpop.f32.mrf.mxu0
    %v715 = vadd.f32 0.0, %v714
    %716 = vdwg.mxu0
    %v717 = vadd.f32 %v560, %v713
    %v718 = vadd.f32 %v561, %v715
    %719 = vst.msk [vmem:[#allocation13] sm:$0xff] %vm158, %v717
    %720 = vst.msk [vmem:[#allocation13 + $0x8] sm:$0xff] %vm158, %v718
    // Predicated region
    $region62: #{tpu_custom_call.1} parent=1 // pred_check
      _
    $region63: #{tpu_custom_call.1} parent=1 // pred_check_branch
      %722 = sbr.rel (0) target = $region65
    $region64: #{tpu_custom_call.1} parent=1 // pred_region
      %724 = vsyncadd [#allocation4], 0
      %s725 = sshll.u32 [#allocation13], 4
      %s726 = int_to_ptr.vmem [resolvable:$true] %s725
      %s727 = sshll.u32 %s9, 4
      %s728 = int_to_ptr.hbm [resolvable:$true] %s727
      %733 = dma.vmem_to_hbm [thread:$0]  %s726, 256, %s728, [#allocation4], 128, 128, 8
    $region65: #{tpu_custom_call.1} parent=1 // pred_fallthru
      _
    // Predicated region
    $region66: #{tpu_custom_call.1} parent=1 // pred_check
      _
    $region67: #{tpu_custom_call.1} parent=1 // pred_check_branch
      %735 = sbr.rel (0) target = $region69
    $region68: #{tpu_custom_call.1} parent=1 // pred_region
      %737 = dma.done [#allocation4], 256
    $region69: #{tpu_custom_call.1} parent=1 // pred_fallthru
      _
    %738 = vsyncpa [#allocation3], 1
    %739 = vsyncpa [#allocation8], 1
    %740 = vsyncpa [#allocation11], 1
    %741 = vsyncpa [#allocation4], 1
    %742 = vsyncpa [#allocation5], 1

</llo_original>
